<compile_context>
chip_gen: v7x
topology: tpu7x:2x2x1
jax: 0.10.0
libtpu: 0.0.40
codegen_flags: <defaults>
</compile_context>

<pallas_src>
import functools

import jax
import jax.numpy as jnp
from jax.experimental import pallas as pl
from jax.experimental.pallas import tpu as pltpu

D_IN, D_H, D_OUT = 10, 32, 10


def _mlp_kernel(x_ref, w1_ref, b1_ref, w2_ref, b2_ref, w3_ref, b3_ref, o_ref):
    # x_ref:  [D_IN,  TB]  bf16   (batch on lanes)
    # wN_ref: [out,   in]  bf16   (resident across the whole grid)
    # bN_ref: [out,    1]  f32
    # o_ref:  [D_OUT, TB]  f32    (lane-dense store)
    x = x_ref[...]

    h1 = jnp.dot(w1_ref[...], x, preferred_element_type=jnp.float32) + b1_ref[...]
    h1 = jnp.maximum(h1, 0.0)                                   # ReLU (layer1), f32

    h2 = jnp.dot(w2_ref[...], h1.astype(w2_ref.dtype),
                 preferred_element_type=jnp.float32) + b2_ref[...]
    h2 = jnp.maximum(h2, 0.0)                                   # ReLU (layer2), f32

    out = jnp.dot(w3_ref[...], h2.astype(w3_ref.dtype),
                  preferred_element_type=jnp.float32) + b3_ref[...]
    o_ref[...] = jax.nn.sigmoid(out)                            # torch.sigmoid, f32


def _round_up(n, m):
    return pl.cdiv(n, m) * m


@functools.partial(jax.jit, static_argnames=("block_b",))
def fully_connected_forward(x, params, *, block_b=512):
    """x: [B, 10] float32 -> [B, 10] float32 (sigmoid probabilities)."""
    w1, b1, w2, b2, w3, b3 = params
    B = x.shape[0]

    # Batch tile: multiple of 128 (lane-dense), capped so tiny batches don't
    # over-pad. TB<=512 keeps double-buffered blocks far under the scoped-VMEM
    # limits on v5e/v6e and v7x (64 MiB physical).
    tb = min(block_b, _round_up(B, 128))
    b_pad = _round_up(B, tb)

    # bf16 for the HBM-heavy streams (x, weights); accumulate in f32 in-kernel.
    x_t = jnp.pad(x, ((0, b_pad - B), (0, 0))).astype(jnp.bfloat16).T  # [D_IN, b_pad]
    w1b, w2b, w3b = (w.astype(jnp.bfloat16) for w in (w1, w2, w3))

    grid = (b_pad // tb,)
    resident = lambda shape: pl.BlockSpec(shape, lambda i: (0, 0))  # DMA'd once

    out_t = pl.pallas_call(
        _mlp_kernel,
        out_shape=jax.ShapeDtypeStruct((D_OUT, b_pad), jnp.float32),
        grid_spec=pltpu.PrefetchScalarGridSpec(
            num_scalar_prefetch=0,
            grid=grid,
            in_specs=[
                pl.BlockSpec((D_IN, tb), lambda i: (0, i)),   # x tile (pipelined)
                resident((D_H, D_IN)), resident((D_H, 1)),    # layer1  W, b
                resident((D_H, D_H)),  resident((D_H, 1)),    # layer2  W, b
                resident((D_OUT, D_H)), resident((D_OUT, 1)), # layer4  W, b
            ],
            out_specs=pl.BlockSpec((D_OUT, tb), lambda i: (0, i)),
        ),
        compiler_params=pltpu.CompilerParams(
            dimension_semantics=("parallel",),                # megacore on v7x
        ),
    )(x_t, w1b, b1, w2b, b2, w3b, b3)

    return out_t[:, :B].T                                     # back to [B, D_OUT]


def init_params(key):
    """Deterministic init matching nn.Linear: W [out, in], b [out, 1]."""
    ks = jax.random.split(key, 6)

    def linear(kw, kb, fan_in, fan_out):
        bound = 1.0 / jnp.sqrt(fan_in)                        # torch default-ish
        w = jax.random.uniform(kw, (fan_out, fan_in), jnp.float32, -bound, bound)
        b = jax.random.uniform(kb, (fan_out, 1), jnp.float32, -bound, bound)
        return w, b

    w1, b1 = linear(ks[0], ks[1], D_IN, D_H)    # layer1: Linear(10, 32)
    w2, b2 = linear(ks[2], ks[3], D_H, D_H)     # layer2: Linear(32, 32)
    w3, b3 = linear(ks[4], ks[5], D_H, D_OUT)   # layer4: Linear(32, 10)
    return (w1, b1, w2, b2, w3, b3)


def reference_forward(x, params):
    w1, b1, w2, b2, w3, b3 = params
    h1 = jnp.maximum(x @ w1.T + b1.T, 0.0)
    h2 = jnp.maximum(h1 @ w2.T + b2.T, 0.0)
    return jax.nn.sigmoid(h2 @ w3.T + b3.T)


if __name__ == "__main__":
    key = jax.random.PRNGKey(0)
    k_x, k_p = jax.random.split(key)
    params = init_params(k_p)

    # Small batch (single 128-lane tile, padded).
    B = 8
    x = jax.random.normal(k_x, (B, D_IN), dtype=jnp.float32)
    out = jax.block_until_ready(fully_connected_forward(x, params))
    ref = reference_forward(x, params)
    assert out.shape == (B, D_OUT)
    assert jnp.allclose(out, ref, atol=2e-2, rtol=2e-2), "mismatch vs reference (B=8)"

    # Ragged batch exercising multiple grid steps + tail padding.
    B2 = 300
    x2 = jax.random.normal(k_x, (B2, D_IN), dtype=jnp.float32)
    out2 = jax.block_until_ready(fully_connected_forward(x2, params, block_b=128))
    ref2 = reference_forward(x2, params)
    assert out2.shape == (B2, D_OUT)
    assert jnp.allclose(out2, ref2, atol=2e-2, rtol=2e-2), "mismatch vs reference (B=300)"

    print("KERNEL_OK")
</pallas_src>

<mosaic_0001>
module attributes {stable_mosaic.version = 11 : i64} {
  func.func @_mlp_kernel(%arg0: i32, %arg1: memref<10x128xbf16, #tpu.memory_space<vmem>>, %arg2: memref<32x10xbf16, #tpu.memory_space<vmem>>, %arg3: memref<32x1xf32, #tpu.memory_space<vmem>>, %arg4: memref<32x32xbf16, #tpu.memory_space<vmem>>, %arg5: memref<32x1xf32, #tpu.memory_space<vmem>>, %arg6: memref<10x32xbf16, #tpu.memory_space<vmem>>, %arg7: memref<10x1xf32, #tpu.memory_space<vmem>>, %arg8: memref<10x128xf32, #tpu.memory_space<vmem>>) attributes {dimension_semantics = [#tpu.dimension_semantics<parallel>], iteration_bounds = array<i64: 1>, scalar_prefetch = 0 : i64, scratch_operands = 0 : i64, tpu.core_type = #tpu.core_type<tc>, window_params = [{transform_indices = @transform_0, window_bounds = array<i64: 10, 128>}, {pipeline_mode = #tpu.pipeline_mode<synchronous>, transform_indices = @transform_1, window_bounds = array<i64: 32, 10>}, {pipeline_mode = #tpu.pipeline_mode<synchronous>, transform_indices = @transform_2, window_bounds = array<i64: 32, 1>}, {pipeline_mode = #tpu.pipeline_mode<synchronous>, transform_indices = @transform_3, window_bounds = array<i64: 32, 32>}, {pipeline_mode = #tpu.pipeline_mode<synchronous>, transform_indices = @transform_4, window_bounds = array<i64: 32, 1>}, {pipeline_mode = #tpu.pipeline_mode<synchronous>, transform_indices = @transform_5, window_bounds = array<i64: 10, 32>}, {pipeline_mode = #tpu.pipeline_mode<synchronous>, transform_indices = @transform_6, window_bounds = array<i64: 10, 1>}, {transform_indices = @transform_7, window_bounds = array<i64: 10, 128>}]} {
    %c0 = arith.constant 0 : index
    %c0_0 = arith.constant 0 : index
    %0 = vector.load %arg1[%c0, %c0_0] : memref<10x128xbf16, #tpu.memory_space<vmem>>, vector<10x128xbf16>
    %c0_1 = arith.constant 0 : index
    %c0_2 = arith.constant 0 : index
    %1 = vector.load %arg2[%c0_1, %c0_2] : memref<32x10xbf16, #tpu.memory_space<vmem>>, vector<32x10xbf16>
    %cst = arith.constant dense<0.000000e+00> : vector<32x128xf32>
    %2 = tpu.matmul %1, %0, %cst {dimension_numbers = #tpu.dot_dimension_numbers<[1], [0], [0], [1], [0, 0, 1, 1], [], []>} : vector<32x10xbf16>, vector<10x128xbf16>, vector<32x128xf32> -> vector<32x128xf32>
    %c0_3 = arith.constant 0 : index
    %c0_4 = arith.constant 0 : index
    %3 = vector.load %arg3[%c0_3, %c0_4] : memref<32x1xf32, #tpu.memory_space<vmem>>, vector<32x1xf32>
    %4 = vector.broadcast %3 : vector<32x1xf32> to vector<32x128xf32>
    %5 = arith.addf %2, %4 : vector<32x128xf32>
    %cst_5 = arith.constant 0.000000e+00 : f32
    %6 = vector.broadcast %cst_5 : f32 to vector<32x128xf32>
    %7 = arith.maximumf %5, %6 : vector<32x128xf32>
    %c0_6 = arith.constant 0 : index
    %c0_7 = arith.constant 0 : index
    %8 = vector.load %arg4[%c0_6, %c0_7] : memref<32x32xbf16, #tpu.memory_space<vmem>>, vector<32x32xbf16>
    %9 = arith.truncf %7 : vector<32x128xf32> to vector<32x128xbf16>
    %cst_8 = arith.constant dense<0.000000e+00> : vector<32x128xf32>
    %10 = tpu.matmul %8, %9, %cst_8 {dimension_numbers = #tpu.dot_dimension_numbers<[1], [0], [0], [1], [0, 0, 1, 1], [], []>} : vector<32x32xbf16>, vector<32x128xbf16>, vector<32x128xf32> -> vector<32x128xf32>
    %c0_9 = arith.constant 0 : index
    %c0_10 = arith.constant 0 : index
    %11 = vector.load %arg5[%c0_9, %c0_10] : memref<32x1xf32, #tpu.memory_space<vmem>>, vector<32x1xf32>
    %12 = vector.broadcast %11 : vector<32x1xf32> to vector<32x128xf32>
    %13 = arith.addf %10, %12 : vector<32x128xf32>
    %cst_11 = arith.constant 0.000000e+00 : f32
    %14 = vector.broadcast %cst_11 : f32 to vector<32x128xf32>
    %15 = arith.maximumf %13, %14 : vector<32x128xf32>
    %c0_12 = arith.constant 0 : index
    %c0_13 = arith.constant 0 : index
    %16 = vector.load %arg6[%c0_12, %c0_13] : memref<10x32xbf16, #tpu.memory_space<vmem>>, vector<10x32xbf16>
    %17 = arith.truncf %15 : vector<32x128xf32> to vector<32x128xbf16>
    %cst_14 = arith.constant dense<0.000000e+00> : vector<10x128xf32>
    %18 = tpu.matmul %16, %17, %cst_14 {dimension_numbers = #tpu.dot_dimension_numbers<[1], [0], [0], [1], [0, 0, 1, 1], [], []>} : vector<10x32xbf16>, vector<32x128xbf16>, vector<10x128xf32> -> vector<10x128xf32>
    %c0_15 = arith.constant 0 : index
    %c0_16 = arith.constant 0 : index
    %19 = vector.load %arg7[%c0_15, %c0_16] : memref<10x1xf32, #tpu.memory_space<vmem>>, vector<10x1xf32>
    %20 = vector.broadcast %19 : vector<10x1xf32> to vector<10x128xf32>
    %21 = arith.addf %18, %20 : vector<10x128xf32>
    %22 = arith.negf %21 : vector<10x128xf32>
    %23 = math.exp %22 : vector<10x128xf32>
    %cst_17 = arith.constant 1.000000e+00 : f32
    %24 = vector.broadcast %cst_17 : f32 to vector<10x128xf32>
    %25 = arith.addf %24, %23 : vector<10x128xf32>
    %26 = arith.divf %24, %25 : vector<10x128xf32>
    %c0_18 = arith.constant 0 : index
    %c0_19 = arith.constant 0 : index
    %27 = vector.load %arg8[%c0_18, %c0_19] : memref<10x128xf32, #tpu.memory_space<vmem>>, vector<10x128xf32>
    tpu.vector_store %arg8[%c0_18, %c0_19], %26 {strides = array<i32>} : memref<10x128xf32, #tpu.memory_space<vmem>>, vector<10x128xf32>,
    return
  }
  func.func @transform_0(%arg0: i32) -> (i32, i32) {
    %c0_i32 = arith.constant 0 : i32
    %c0_i32_0 = arith.constant 0 : i32
    return %c0_i32, %arg0 : i32, i32
  }
  func.func @transform_1(%arg0: i32) -> (i32, i32) {
    %c0_i32 = arith.constant 0 : i32
    %c0_i32_0 = arith.constant 0 : i32
    %c0_i32_1 = arith.constant 0 : i32
    return %c0_i32, %c0_i32_0 : i32, i32
  }
  func.func @transform_2(%arg0: i32) -> (i32, i32) {
    %c0_i32 = arith.constant 0 : i32
    %c0_i32_0 = arith.constant 0 : i32
    %c0_i32_1 = arith.constant 0 : i32
    return %c0_i32, %c0_i32_0 : i32, i32
  }
  func.func @transform_3(%arg0: i32) -> (i32, i32) {
    %c0_i32 = arith.constant 0 : i32
    %c0_i32_0 = arith.constant 0 : i32
    %c0_i32_1 = arith.constant 0 : i32
    return %c0_i32, %c0_i32_0 : i32, i32
  }
  func.func @transform_4(%arg0: i32) -> (i32, i32) {
    %c0_i32 = arith.constant 0 : i32
    %c0_i32_0 = arith.constant 0 : i32
    %c0_i32_1 = arith.constant 0 : i32
    return %c0_i32, %c0_i32_0 : i32, i32
  }
  func.func @transform_5(%arg0: i32) -> (i32, i32) {
    %c0_i32 = arith.constant 0 : i32
    %c0_i32_0 = arith.constant 0 : i32
    %c0_i32_1 = arith.constant 0 : i32
    return %c0_i32, %c0_i32_0 : i32, i32
  }
  func.func @transform_6(%arg0: i32) -> (i32, i32) {
    %c0_i32 = arith.constant 0 : i32
    %c0_i32_0 = arith.constant 0 : i32
    %c0_i32_1 = arith.constant 0 : i32
    return %c0_i32, %c0_i32_0 : i32, i32
  }
  func.func @transform_7(%arg0: i32) -> (i32, i32) {
    %c0_i32 = arith.constant 0 : i32
    %c0_i32_0 = arith.constant 0 : i32
    return %c0_i32, %arg0 : i32, i32
  }
}

</mosaic_0001>

<llo_original>
// kernel: fully_connected_forward.1
$region0: #{fully_connected_forward.1}
  #allocation0 [shape = 'u32[]', space=smem, size = 0x4, offset = 0x4, fixed_abs, tag = 'smem constant byte address 0x4 - core index']
  #allocation1 [shape = 'u32[144,128]{1,0:T(1,128)}', space=vmem, size = 0x12000, scoped, tag = 'internal scratch']
  %s0 = inlined_call_operand.vmem [shape: bf16[10,128], index: 0, kind: input, shape index: {}]
  %s1 = inlined_call_operand.vmem [shape: bf16[32,10], index: 1, kind: input, shape index: {}]
  %s2 = inlined_call_operand.vmem [shape: f32[32,1], index: 2, kind: input, shape index: {}]
  %s3 = inlined_call_operand.vmem [shape: bf16[32,32], index: 3, kind: input, shape index: {}]
  %s4 = inlined_call_operand.vmem [shape: f32[32,1], index: 4, kind: input, shape index: {}]
  %s5 = inlined_call_operand.vmem [shape: bf16[10,32], index: 5, kind: input, shape index: {}]
  %s6 = inlined_call_operand.vmem [shape: f32[10,1], index: 6, kind: input, shape index: {}]
  %s7 = inlined_call_operand.vmem [shape: f32[10,128], index: 7, kind: output, shape index: {}]
  %s8 = sld [smem:[#allocation0]]
  $region38: #{fully_connected_forward.1} parent=0
    _
  %s10 = ssub.s32 1, %s8
  %s11 = scalar_select 0, %s10, %s8
  // Predicated region
  $region2: #{fully_connected_forward.1} parent=0 // pred_check
    _
  $region3: #{fully_connected_forward.1} parent=0 // pred_check_branch
    %13 = sbr.rel (0) target = $region5
  $region4: #{fully_connected_forward.1} parent=0 // pred_region
    _
  $region5: #{fully_connected_forward.1} parent=0 // pred_fallthru
    _
  // Predicated region
  $region6: #{fully_connected_forward.1} parent=0 // pred_check
    _
  $region7: #{fully_connected_forward.1} parent=0 // pred_check_branch
    %15 = sbr.rel (0) target = $region9
  $region8: #{fully_connected_forward.1} parent=0 // pred_region
    _
  $region9: #{fully_connected_forward.1} parent=0 // pred_fallthru
    _
  // Predicated region
  $region10: #{fully_connected_forward.1} parent=0 // pred_check
    _
  $region11: #{fully_connected_forward.1} parent=0 // pred_check_branch
    %17 = sbr.rel (0) target = $region13
  $region12: #{fully_connected_forward.1} parent=0 // pred_region
    _
  $region13: #{fully_connected_forward.1} parent=0 // pred_fallthru
    _
  // Predicated region
  $region14: #{fully_connected_forward.1} parent=0 // pred_check
    _
  $region15: #{fully_connected_forward.1} parent=0 // pred_check_branch
    %19 = sbr.rel (0) target = $region17
  $region16: #{fully_connected_forward.1} parent=0 // pred_region
    _
  $region17: #{fully_connected_forward.1} parent=0 // pred_fallthru
    _
  // Predicated region
  $region18: #{fully_connected_forward.1} parent=0 // pred_check
    _
  $region19: #{fully_connected_forward.1} parent=0 // pred_check_branch
    %21 = sbr.rel (0) target = $region21
  $region20: #{fully_connected_forward.1} parent=0 // pred_region
    _
  $region21: #{fully_connected_forward.1} parent=0 // pred_fallthru
    _
  // Predicated region
  $region22: #{fully_connected_forward.1} parent=0 // pred_check
    _
  $region23: #{fully_connected_forward.1} parent=0 // pred_check_branch
    %23 = sbr.rel (0) target = $region25
  $region24: #{fully_connected_forward.1} parent=0 // pred_region
    _
  $region25: #{fully_connected_forward.1} parent=0 // pred_fallthru
    _
  // Predicated region
  $region26: #{fully_connected_forward.1} parent=0 // pred_check
    _
  $region27: #{fully_connected_forward.1} parent=0 // pred_check_branch
    %25 = sbr.rel (0) target = $region29
  $region28: #{fully_connected_forward.1} parent=0 // pred_region
    _
  $region29: #{fully_connected_forward.1} parent=0 // pred_fallthru
    _
  %v27 = vld [vmem:[%s0] sm:$0xf]
  %v28 = vld [vmem:[%s0 + $0x4] sm:$0x1]
  %v29 = vld [vmem:[%s1] sm:$0xf]
  %v30 = vld [vmem:[%s1 + $0x4] sm:$0xf]
  %v31 = vld [vmem:[%s1 + $0x8] sm:$0xf]
  %v32 = vld [vmem:[%s1 + $0xc] sm:$0xf]
  %v33 = vld [vmem:[%s2] sm:$0xff]
  %v34 = vld [vmem:[%s2 + $0x8] sm:$0xff]
  %v35 = vld [vmem:[%s2 + $0x10] sm:$0xff]
  %v36 = vld [vmem:[%s2 + $0x18] sm:$0xff]
  %38 = vset.pattern.permute.xlu0 0
  %39 = vperm.xlu0 %38, %v33
  %v40 = vpop.permute.xlu0 %39
  %43 = vset.pattern.permute.xlu0 0
  %44 = vperm.xlu0 %43, %v34
  %v45 = vpop.permute.xlu0 %44
  %48 = vset.pattern.permute.xlu0 0
  %49 = vperm.xlu0 %48, %v35
  %v50 = vpop.permute.xlu0 %49
  %53 = vset.pattern.permute.xlu0 0
  %54 = vperm.xlu0 %53, %v36
  %v55 = vpop.permute.xlu0 %54
  %v61 = vunpack.c.l.b16 %v29
  %v62 = vunpack.c.l.b16 %v30
  %v63 = vunpack.c.l.b16 %v31
  %v64 = vunpack.c.l.b16 %v32
  %v65 = vpack.c.b16 %v62, %v61
  %v66 = vpack.c.b16 %v64, %v63
  %v69 = vunpack.c.l.b16 %v27
  %v70 = vunpack.c.l.b16 %v28
  %v71 = vpack.c.b16 %v70, %v69
  %vm72 = vcmask 80896
  %v74 = vsel %vm72, %v65, 0
  %v77 = vsel %vm72, %v66, 0
  %vm79 = vcmask 1044480
  %v81 = vsel %vm79, %v71, 0
  %83 = vmatprep.subr.bf16.mxu0 0
  %84 = vmatpush1.bf16.msra.mxu0 %v81
  %85 = vmatprep.subr.bf16.mxu0 0
  %86 = vmatpush1.bf16.msra.mxu0 0
  %87 = vmatprep.subr.bf16.mxu0 0
  %88 = vmatpush1.bf16.msra.mxu0 0
  %89 = vmatprep.subr.bf16.mxu0 0
  %90 = vmatpush1.bf16.msra.mxu0 0
  %91 = vmatprep.subr.bf16.mxu0 0
  %92 = vmatpush1.bf16.msra.mxu0 0
  %93 = vmatprep.subr.bf16.mxu0 0
  %94 = vmatpush1.bf16.msra.mxu0 0
  %95 = vmatprep.subr.bf16.mxu0 0
  %96 = vmatpush1.bf16.msra.mxu0 0
  %97 = vmatprep.subr.bf16.mxu0 0
  %98 = vmatpush1.bf16.msra.mxu0 0
  %99 = vmatprep.subr.bf16.mxu0 0
  %100 = vmatpush1.bf16.msra.mxu0 0
  %101 = vmatprep.subr.bf16.mxu0 0
  %102 = vmatpush1.bf16.msra.mxu0 0
  %103 = vmatprep.subr.bf16.mxu0 0
  %104 = vmatpush1.bf16.msra.mxu0 0
  %105 = vmatprep.subr.bf16.mxu0 0
  %106 = vmatpush1.bf16.msra.mxu0 0
  %107 = vmatprep.subr.bf16.mxu0 0
  %108 = vmatpush1.bf16.msra.mxu0 0
  %109 = vmatprep.subr.bf16.mxu0 0
  %110 = vmatpush1.bf16.msra.mxu0 0
  %111 = vmatprep.subr.bf16.mxu0 0
  %112 = vmatpush1.bf16.msra.mxu0 0
  %113 = vmatprep.subr.bf16.mxu0 0
  %114 = vmatpush1.bf16.msra.mxu0 0
  %115 = vmatprep.mubr.bf16.mxu0 0
  %116 = vmatmul.mubr.bf16.gmra.mrb[0].mxu0 %v74
  %v117 = vpop.f32.mrb[0].mxu0
  %v118 = vadd.f32 %v40, %v117
  %v119 = vpop.f32.mrb[0].mxu0
  %v120 = vpop.f32.mrb[0].mxu0
  %v121 = vadd.f32 %v45, %v120
  %v122 = vpop.f32.mrb[0].mxu0
  %123 = vmatprep.mubr.bf16.mxu0 0
  %124 = vmatmul.mubr.bf16.gmra.mrb[0].mxu0 %v77
  %v125 = vpop.f32.mrb[0].mxu0
  %v126 = vadd.f32 %v50, %v125
  %v127 = vpop.f32.mrb[0].mxu0
  %v128 = vpop.f32.mrb[0].mxu0
  %v129 = vadd.f32 %v55, %v128
  %v130 = vpop.f32.mrb[0].mxu0
  %131 = vdwg.mxu0
  %v132 = vmax.f32 %v118, 0.0
  %v133 = vmax.f32 %v121, 0.0
  %v134 = vmax.f32 %v126, 0.0
  %v135 = vmax.f32 %v129, 0.0
  %v136 = vld [vmem:[%s3] sm:$0xf]
  %v137 = vld [vmem:[%s3 + $0x4] sm:$0xf]
  %v138 = vld [vmem:[%s3 + $0x8] sm:$0xf]
  %v139 = vld [vmem:[%s3 + $0xc] sm:$0xf]
  %v140 = vpack.c.bf16 %v133, %v132
  %v141 = vpack.c.bf16 %v135, %v134
  %v142 = vld [vmem:[%s4] sm:$0xff]
  %v143 = vld [vmem:[%s4 + $0x8] sm:$0xff]
  %v144 = vld [vmem:[%s4 + $0x10] sm:$0xff]
  %v145 = vld [vmem:[%s4 + $0x18] sm:$0xff]
  %147 = vset.pattern.permute.xlu0 0
  %148 = vperm.xlu0 %147, %v142
  %v149 = vpop.permute.xlu0 %148
  %152 = vset.pattern.permute.xlu0 0
  %153 = vperm.xlu0 %152, %v143
  %v154 = vpop.permute.xlu0 %153
  %157 = vset.pattern.permute.xlu0 0
  %158 = vperm.xlu0 %157, %v144
  %v159 = vpop.permute.xlu0 %158
  %162 = vset.pattern.permute.xlu0 0
  %163 = vperm.xlu0 %162, %v145
  %v164 = vpop.permute.xlu0 %163
  %v170 = vunpack.c.l.b16 %v136
  %v171 = vunpack.c.l.b16 %v137
  %v172 = vunpack.c.l.b16 %v138
  %v173 = vunpack.c.l.b16 %v139
  %v174 = vpack.c.b16 %v171, %v170
  %v175 = vpack.c.b16 %v173, %v172
  %vm176 = vcmask 261120
  %v178 = vsel %vm176, %v174, 0
  %v181 = vsel %vm176, %v175, 0
  %183 = vmatprep.subr.bf16.mxu0 0
  %184 = vmatpush1.bf16.msra.mxu0 %v140
  %185 = vmatprep.subr.bf16.mxu0 0
  %186 = vmatpush1.bf16.msra.mxu0 %v141
  %187 = vmatprep.subr.bf16.mxu0 0
  %188 = vmatpush1.bf16.msra.mxu0 0
  %189 = vmatprep.subr.bf16.mxu0 0
  %190 = vmatpush1.bf16.msra.mxu0 0
  %191 = vmatprep.subr.bf16.mxu0 0
  %192 = vmatpush1.bf16.msra.mxu0 0
  %193 = vmatprep.subr.bf16.mxu0 0
  %194 = vmatpush1.bf16.msra.mxu0 0
  %195 = vmatprep.subr.bf16.mxu0 0
  %196 = vmatpush1.bf16.msra.mxu0 0
  %197 = vmatprep.subr.bf16.mxu0 0
  %198 = vmatpush1.bf16.msra.mxu0 0
  %199 = vmatprep.subr.bf16.mxu0 0
  %200 = vmatpush1.bf16.msra.mxu0 0
  %201 = vmatprep.subr.bf16.mxu0 0
  %202 = vmatpush1.bf16.msra.mxu0 0
  %203 = vmatprep.subr.bf16.mxu0 0
  %204 = vmatpush1.bf16.msra.mxu0 0
  %205 = vmatprep.subr.bf16.mxu0 0
  %206 = vmatpush1.bf16.msra.mxu0 0
  %207 = vmatprep.subr.bf16.mxu0 0
  %208 = vmatpush1.bf16.msra.mxu0 0
  %209 = vmatprep.subr.bf16.mxu0 0
  %210 = vmatpush1.bf16.msra.mxu0 0
  %211 = vmatprep.subr.bf16.mxu0 0
  %212 = vmatpush1.bf16.msra.mxu0 0
  %213 = vmatprep.subr.bf16.mxu0 0
  %214 = vmatpush1.bf16.msra.mxu0 0
  %215 = vmatprep.mubr.bf16.mxu0 0
  %216 = vmatmul.mubr.bf16.gmra.mrb[0].mxu0 %v178
  %v217 = vpop.f32.mrb[0].mxu0
  %v218 = vadd.f32 %v149, %v217
  %v219 = vpop.f32.mrb[0].mxu0
  %v220 = vpop.f32.mrb[0].mxu0
  %v221 = vadd.f32 %v154, %v220
  %v222 = vpop.f32.mrb[0].mxu0
  %223 = vmatprep.mubr.bf16.mxu0 0
  %224 = vmatmul.mubr.bf16.gmra.mrb[0].mxu0 %v181
  %v225 = vpop.f32.mrb[0].mxu0
  %v226 = vadd.f32 %v159, %v225
  %v227 = vpop.f32.mrb[0].mxu0
  %v228 = vpop.f32.mrb[0].mxu0
  %v229 = vadd.f32 %v164, %v228
  %v230 = vpop.f32.mrb[0].mxu0
  %231 = vdwg.mxu0
  %v232 = vmax.f32 %v218, 0.0
  %v233 = vmax.f32 %v221, 0.0
  %v234 = vmax.f32 %v226, 0.0
  %v235 = vmax.f32 %v229, 0.0
  %v236 = vld [vmem:[%s5] sm:$0xf]
  %v237 = vld [vmem:[%s5 + $0x4] sm:$0x1]
  %v238 = vpack.c.bf16 %v233, %v232
  %v239 = vpack.c.bf16 %v235, %v234
  %v240 = vld [vmem:[%s6] sm:$0xff]
  %v241 = vld [vmem:[%s6 + $0x8] sm:$0x3]
  %243 = vset.pattern.permute.xlu0 0
  %244 = vperm.xlu0 %243, %v240
  %v245 = vpop.permute.xlu0 %244
  %248 = vset.pattern.permute.xlu0 0
  %249 = vperm.xlu0 %248, %v241
  %v250 = vpop.permute.xlu0 %249
  %v254 = vunpack.c.l.b16 %v236
  %v255 = vunpack.c.l.b16 %v237
  %v256 = vpack.c.b16 %v255, %v254
  %v258 = vsel %vm176, %v256, 0
  %260 = vmatprep.subr.bf16.mxu0 0
  %261 = vmatpush1.bf16.msra.mxu0 %v238
  %262 = vmatprep.subr.bf16.mxu0 0
  %263 = vmatpush1.bf16.msra.mxu0 %v239
  %264 = vmatprep.subr.bf16.mxu0 0
  %265 = vmatpush1.bf16.msra.mxu0 0
  %266 = vmatprep.subr.bf16.mxu0 0
  %267 = vmatpush1.bf16.msra.mxu0 0
  %268 = vmatprep.subr.bf16.mxu0 0
  %269 = vmatpush1.bf16.msra.mxu0 0
  %270 = vmatprep.subr.bf16.mxu0 0
  %271 = vmatpush1.bf16.msra.mxu0 0
  %272 = vmatprep.subr.bf16.mxu0 0
  %273 = vmatpush1.bf16.msra.mxu0 0
  %274 = vmatprep.subr.bf16.mxu0 0
  %275 = vmatpush1.bf16.msra.mxu0 0
  %276 = vmatprep.subr.bf16.mxu0 0
  %277 = vmatpush1.bf16.msra.mxu0 0
  %278 = vmatprep.subr.bf16.mxu0 0
  %279 = vmatpush1.bf16.msra.mxu0 0
  %280 = vmatprep.subr.bf16.mxu0 0
  %281 = vmatpush1.bf16.msra.mxu0 0
  %282 = vmatprep.subr.bf16.mxu0 0
  %283 = vmatpush1.bf16.msra.mxu0 0
  %284 = vmatprep.subr.bf16.mxu0 0
  %285 = vmatpush1.bf16.msra.mxu0 0
  %286 = vmatprep.subr.bf16.mxu0 0
  %287 = vmatpush1.bf16.msra.mxu0 0
  %288 = vmatprep.subr.bf16.mxu0 0
  %289 = vmatpush1.bf16.msra.mxu0 0
  %290 = vmatprep.subr.bf16.mxu0 0
  %291 = vmatpush1.bf16.msra.mxu0 0
  %292 = vmatprep.mubr.bf16.mxu0 0
  %293 = vmatmul.mubr.bf16.gmra.mrb[0].mxu0 %v258
  %v294 = vpop.f32.mrb[0].mxu0
  %v295 = vadd.f32 %v245, %v294
  %v296 = vpop.f32.mrb[0].mxu0
  %v297 = vpop.f32.mrb[0].mxu0
  %v298 = vadd.f32 %v250, %v297
  %v299 = vpop.f32.mrb[0].mxu0
  %300 = vdwg.mxu0
  %v301 = vxor.u32 %v295, 2147483648
  %v302 = vxor.u32 %v298, 2147483648
  %v303 = vmul.f32 %v301, 1.442695
  %v304 = vpow.pop %v303
  %v305 = vmul.f32 %v302, 1.442695
  %v306 = vpow.pop %v305
  %v307 = vadd.f32 %v304, 1.0
  %v308 = vadd.f32 %v306, 1.0
  %v309 = vrcp.pop %v307
  %v310 = vmul.f32 1.0, %v309
  %v311 = vrcp.pop %v308
  %v312 = vmul.f32 1.0, %v311
  %313 = vst [vmem:[%s7] sm:$0xff] %v310
  %314 = vst [vmem:[%s7 + $0x8] sm:$0x3] %v312
  // Predicated region
  $region30: #{fully_connected_forward.1} parent=0 // pred_check
    _
  $region31: #{fully_connected_forward.1} parent=0 // pred_check_branch
    %316 = sbr.rel (0) target = $region33
  $region32: #{fully_connected_forward.1} parent=0 // pred_region
    _
  $region33: #{fully_connected_forward.1} parent=0 // pred_fallthru
    _
  // Predicated region
  $region34: #{fully_connected_forward.1} parent=0 // pred_check
    _
  $region35: #{fully_connected_forward.1} parent=0 // pred_check_branch
    %318 = sbr.rel (0) target = $region37
  $region36: #{fully_connected_forward.1} parent=0 // pred_region
    _
  $region37: #{fully_connected_forward.1} parent=0 // pred_fallthru
    _

</llo_original>
